<compile_context>
chip_gen: v6e
topology: v6e:2x2x1
jax: 0.10.0
libtpu: 0.0.40
codegen_flags: <defaults>
</compile_context>

<pallas_src>
import jax
import jax.numpy as jnp
from jax import lax
from jax.experimental import pallas as pl
from jax.experimental.pallas import tpu as pltpu


def _choose_tq(H: int, L: int, D: int, budget_bytes: int) -> int:
    """Largest query tile whose per-step fp32 live set fits the VMEM budget.

    Per q-step (fp32 bytes):
      att out block (double-buffered)        : 2 * H*TQ*L*4
      scores / e / att live intermediates    : ~3 * H*TQ*L*4
      q block (double-buffered)              : 2 * H*TQ*D*4
      ctx slab out (double-buffered)         : 2 * TQ*H*D*4
    Resident across q-steps: K and V blocks (double-buffered): 2*2*H*L*D*4.
    """
    kv_resident = 2 * 2 * H * L * D * 4
    for tq in (1024, 512, 256, 128, 64, 32, 16, 8):
        if tq > L or L % tq != 0:
            continue
        per_step = (5 * H * tq * L + 2 * H * tq * D + 2 * tq * H * D) * 4
        if kv_resident + per_step <= budget_bytes:
            return tq
    return L  # tiny / odd L: single tile


def _make_attn_kernel(inv_scale: float):
    inv_scale = float(inv_scale)

    def attn_kernel(q_ref, k_ref, v_ref, mask_ref, ctx_ref, att_ref):
        # q_ref: (H, TQ, D); k_ref/v_ref: (H, L, D); mask_ref: (1, L)
        # ctx_ref: (TQ, H*D); att_ref: (H, TQ, L)
        H, TQ, D = q_ref.shape

        # Scale in fp32, then feed the MXU bf16 operands (fp32 accumulation).
        q = (q_ref[...] * inv_scale).astype(jnp.bfloat16)
        k = k_ref[...].astype(jnp.bfloat16)
        v = v_ref[...].astype(jnp.bfloat16)

        # scores[h, i, j] = sum_d q[h, i, d] * k[h, j, d]   (NT form, no K transpose)
        scores = lax.dot_general(
            q, k,
            dimension_numbers=(((2,), (2,)), ((0,), (0,))),
            preferred_element_type=jnp.float32,
        )  # (H, TQ, L) fp32

        # masked_fill semantics: key positions where mask == 0 get -1e9
        # (matches the reference exactly, incl. fully-masked rows -> uniform).
        scores = jnp.where(mask_ref[...] == 0.0, jnp.float32(-1e9), scores)

        # Numerically-stable softmax along the key axis (fp32).
        scores = scores - jnp.max(scores, axis=-1, keepdims=True)
        e = jnp.exp(scores)
        # Exact reciprocal on the tiny (H, TQ, 1) denominator so att rows sum to 1.
        att = e * (1.0 / jnp.sum(e, axis=-1, keepdims=True))

        # NOTE: at toy L (=8) this store is lane-sparse (8 of 128 lanes, vst.msk);
        # it becomes lane-dense automatically once L >= 128.
        att_ref[...] = att.astype(att_ref.dtype)

        # ctx[h, i, d] = sum_j att[h, i, j] * v[h, j, d]
        ctx = lax.dot_general(
            att.astype(jnp.bfloat16), v,
            dimension_numbers=(((2,), (1,)), ((0,), (0,))),
            preferred_element_type=jnp.float32,
        )  # (H, TQ, D) fp32

        # Single relayout (no per-head concat): (H, TQ, D) -> (TQ, H*D) lane-dense slab.
        ctx_ref[...] = (
            jnp.swapaxes(ctx, 0, 1).reshape(TQ, H * D).astype(ctx_ref.dtype)
        )

    return attn_kernel


def scaled_dot_product_attention(
    Q, K, V, mask, scale: float, *,
    att_dtype=jnp.float32,
    vmem_limit_bytes: int = 64 * 1024 * 1024,   # above scoped defaults, v7x-safe
    vmem_budget_bytes: int = 40 * 1024 * 1024,  # tile-selection budget (headroom)
):
    """Q, K, V: (B, H, L, D); mask: (B, 1, 1, L) or None. Returns (context, att)."""
    B, H, L, D = Q.shape
    inv_scale = 1.0 / float(scale)

    # Mask values (1 = keep, 0 = pad) as a (B, 1, L) fp32 array.
    if mask is None:
        mask_bl = jnp.ones((B, 1, L), dtype=jnp.float32)
    else:
        mask_bl = mask.reshape(B, 1, L).astype(jnp.float32)

    TQ = _choose_tq(H, L, D, vmem_budget_bytes)
    NQ = L // TQ

    kernel = _make_attn_kernel(inv_scale)

    q_spec = pl.BlockSpec((None, H, TQ, D), lambda b, q: (b, 0, q, 0))
    kv_spec = pl.BlockSpec((None, H, L, D), lambda b, q: (b, 0, 0, 0))   # resident across q
    mask_spec = pl.BlockSpec((None, 1, L), lambda b, q: (b, 0, 0))       # resident across q
    ctx_spec = pl.BlockSpec((None, TQ, H * D), lambda b, q: (b, q, 0))
    att_spec = pl.BlockSpec((None, H, TQ, L), lambda b, q: (b, 0, q, 0))

    ctx_flat, att = pl.pallas_call(
        kernel,
        out_shape=(
            jax.ShapeDtypeStruct((B, L, H * D), Q.dtype),
            jax.ShapeDtypeStruct((B, H, L, L), att_dtype),
        ),
        grid_spec=pltpu.PrefetchScalarGridSpec(
            num_scalar_prefetch=0,
            grid=(B, NQ),
            in_specs=[q_spec, kv_spec, kv_spec, mask_spec],
            out_specs=[ctx_spec, att_spec],
        ),
        compiler_params=pltpu.CompilerParams(
            dimension_semantics=("parallel", "parallel"),
            vmem_limit_bytes=vmem_limit_bytes,
        ),
    )(Q, K, V, mask_bl)

    # (B, L, H*D) -> (B, H, L, D): free reshape + tiny transpose outside the kernel.
    context = ctx_flat.reshape(B, L, H, D).transpose(0, 2, 1, 3)
    return context, att


def _reference(Q, K, V, mask, scale):
    att = jnp.matmul(Q / scale, jnp.swapaxes(K, 2, 3))
    if mask is not None:
        att = jnp.where(mask == 0, -1e9, att)
    att = jax.nn.softmax(att, axis=-1)
    ctx = jnp.matmul(att, V)
    return ctx, att


if __name__ == "__main__":
    # Small shapes consistent with the module's forward:
    # batch=2, n_heads=4, word_pad_len=8, d_k=32   (H * d_k = 128 lanes)
    B, H, L, D = 2, 4, 8, 32
    scale = float(D) ** 0.5

    key = jax.random.PRNGKey(0)
    kq, kk, kv = jax.random.split(key, 3)
    Q = jax.random.normal(kq, (B, H, L, D), dtype=jnp.float32)
    K = jax.random.normal(kk, (B, H, L, D), dtype=jnp.float32)
    V = jax.random.normal(kv, (B, H, L, D), dtype=jnp.float32)

    # Padding mask: last 2 positions of batch 1 are padding (mask == 0).
    mask = jnp.ones((B, 1, 1, L), dtype=jnp.float32)
    mask = mask.at[1, 0, 0, L - 2:].set(0.0)

    context, att = scaled_dot_product_attention(Q, K, V, mask, scale)
    context = jax.block_until_ready(context)
    att = jax.block_until_ready(att)

    ctx_ref, att_ref = _reference(Q, K, V, mask, scale)
    # Tolerances relaxed vs. a pure-fp32 implementation because the two matmuls
    # run with bf16 MXU operands (fp32 accumulation).
    assert jnp.allclose(att, att_ref, atol=5e-2, rtol=5e-2), float(
        jnp.max(jnp.abs(att - att_ref)))
    assert jnp.allclose(context, ctx_ref, atol=5e-2, rtol=5e-2), float(
        jnp.max(jnp.abs(context - ctx_ref)))

    print("KERNEL_OK")
</pallas_src>

<mosaic_0001>
module attributes {stable_mosaic.version = 11 : i64} {
  func.func @attn_kernel(%arg0: i32, %arg1: i32, %arg2: memref<1x4x8x32xf32, #tpu.memory_space<vmem>>, %arg3: memref<1x4x8x32xf32, #tpu.memory_space<vmem>>, %arg4: memref<1x4x8x32xf32, #tpu.memory_space<vmem>>, %arg5: memref<1x1x8xf32, #tpu.memory_space<vmem>>, %arg6: memref<1x8x128xf32, #tpu.memory_space<vmem>>, %arg7: memref<1x4x8x8xf32, #tpu.memory_space<vmem>>) attributes {dimension_semantics = [#tpu.dimension_semantics<parallel>, #tpu.dimension_semantics<parallel>], iteration_bounds = array<i64: 2, 1>, scalar_prefetch = 0 : i64, scratch_operands = 0 : i64, tpu.core_type = #tpu.core_type<tc>, window_params = [{transform_indices = @transform_0, window_bounds = array<i64: 1, 4, 8, 32>}, {transform_indices = @transform_1, window_bounds = array<i64: 1, 4, 8, 32>}, {transform_indices = @transform_2, window_bounds = array<i64: 1, 4, 8, 32>}, {transform_indices = @transform_3, window_bounds = array<i64: 1, 1, 8>}, {transform_indices = @transform_4, window_bounds = array<i64: 1, 8, 128>}, {transform_indices = @transform_5, window_bounds = array<i64: 1, 4, 8, 8>}]} {
    %c0 = arith.constant 0 : index
    %c0_0 = arith.constant 0 : index
    %c0_1 = arith.constant 0 : index
    %c0_2 = arith.constant 0 : index
    %0 = vector.load %arg2[%c0, %c0_0, %c0_1, %c0_2] : memref<1x4x8x32xf32, #tpu.memory_space<vmem>>, vector<1x4x8x32xf32>
    %1 = vector.shape_cast %0 : vector<1x4x8x32xf32> to vector<4x8x32xf32>
    %cst = arith.constant 0.176776692 : f32
    %2 = vector.broadcast %cst : f32 to vector<4x8x32xf32>
    %3 = arith.mulf %1, %2 : vector<4x8x32xf32>
    %4 = arith.truncf %3 : vector<4x8x32xf32> to vector<4x8x32xbf16>
    %c0_3 = arith.constant 0 : index
    %c0_4 = arith.constant 0 : index
    %c0_5 = arith.constant 0 : index
    %c0_6 = arith.constant 0 : index
    %5 = vector.load %arg3[%c0_3, %c0_4, %c0_5, %c0_6] : memref<1x4x8x32xf32, #tpu.memory_space<vmem>>, vector<1x4x8x32xf32>
    %6 = vector.shape_cast %5 : vector<1x4x8x32xf32> to vector<4x8x32xf32>
    %7 = arith.truncf %6 : vector<4x8x32xf32> to vector<4x8x32xbf16>
    %c0_7 = arith.constant 0 : index
    %c0_8 = arith.constant 0 : index
    %c0_9 = arith.constant 0 : index
    %c0_10 = arith.constant 0 : index
    %8 = vector.load %arg4[%c0_7, %c0_8, %c0_9, %c0_10] : memref<1x4x8x32xf32, #tpu.memory_space<vmem>>, vector<1x4x8x32xf32>
    %9 = vector.shape_cast %8 : vector<1x4x8x32xf32> to vector<4x8x32xf32>
    %10 = arith.truncf %9 : vector<4x8x32xf32> to vector<4x8x32xbf16>
    %cst_11 = arith.constant dense<0.000000e+00> : vector<4x8x8xf32>
    %11 = tpu.matmul %4, %7, %cst_11 {dimension_numbers = #tpu.dot_dimension_numbers<[2], [2], [1], [1], [0, 0, 0, 1, 1, 1], [0], [0]>} : vector<4x8x32xbf16>, vector<4x8x32xbf16>, vector<4x8x8xf32> -> vector<4x8x8xf32>
    %c0_12 = arith.constant 0 : index
    %c0_13 = arith.constant 0 : index
    %c0_14 = arith.constant 0 : index
    %12 = vector.load %arg5[%c0_12, %c0_13, %c0_14] : memref<1x1x8xf32, #tpu.memory_space<vmem>>, vector<1x1x8xf32>
    %13 = vector.shape_cast %12 : vector<1x1x8xf32> to vector<1x8xf32>
    %cst_15 = arith.constant 0.000000e+00 : f32
    %14 = vector.broadcast %cst_15 : f32 to vector<1x8xf32>
    %15 = arith.cmpf oeq, %13, %14 : vector<1x8xf32>
    %cst_16 = arith.constant -1.000000e+09 : f32
    %16 = vector.shape_cast %15 : vector<1x8xi1> to vector<1x1x8xi1>
    %17 = vector.broadcast %16 : vector<1x1x8xi1> to vector<4x8x8xi1>
    %18 = vector.broadcast %cst_16 : f32 to vector<4x8x8xf32>
    %19 = arith.select %17, %18, %11 : vector<4x8x8xi1>, vector<4x8x8xf32>
    %cst_17 = arith.constant dense<0xFF800000> : vector<4x8xf32>
    %20 = vector.multi_reduction <maximumf>, %19, %cst_17 [2] : vector<4x8x8xf32> to vector<4x8xf32>
    %21 = vector.shape_cast %20 : vector<4x8xf32> to vector<4x8x1xf32>
    %22 = vector.broadcast %21 : vector<4x8x1xf32> to vector<4x8x8xf32>
    %23 = arith.subf %19, %22 : vector<4x8x8xf32>
    %24 = math.exp %23 : vector<4x8x8xf32>
    %cst_18 = arith.constant dense<0.000000e+00> : vector<4x8xf32>
    %25 = vector.multi_reduction <add>, %24, %cst_18 [2] : vector<4x8x8xf32> to vector<4x8xf32>
    %26 = vector.shape_cast %25 : vector<4x8xf32> to vector<4x8x1xf32>
    %cst_19 = arith.constant 1.000000e+00 : f32
    %27 = vector.broadcast %cst_19 : f32 to vector<4x8x1xf32>
    %28 = arith.divf %27, %26 : vector<4x8x1xf32>
    %29 = vector.broadcast %28 : vector<4x8x1xf32> to vector<4x8x8xf32>
    %30 = arith.mulf %24, %29 : vector<4x8x8xf32>
    %c0_20 = arith.constant 0 : index
    %c0_21 = arith.constant 0 : index
    %c0_22 = arith.constant 0 : index
    %c0_23 = arith.constant 0 : index
    %31 = vector.load %arg7[%c0_20, %c0_21, %c0_22, %c0_23] : memref<1x4x8x8xf32, #tpu.memory_space<vmem>>, vector<1x4x8x8xf32>
    %32 = vector.shape_cast %31 : vector<1x4x8x8xf32> to vector<4x8x8xf32>
    %33 = vector.shape_cast %30 : vector<4x8x8xf32> to vector<1x4x8x8xf32>
    tpu.vector_store %arg7[%c0_20, %c0_21, %c0_22, %c0_23], %33 {strides = array<i32>} : memref<1x4x8x8xf32, #tpu.memory_space<vmem>>, vector<1x4x8x8xf32>,
    %34 = arith.truncf %30 : vector<4x8x8xf32> to vector<4x8x8xbf16>
    %cst_24 = arith.constant dense<0.000000e+00> : vector<4x8x32xf32>
    %35 = tpu.matmul %34, %10, %cst_24 {dimension_numbers = #tpu.dot_dimension_numbers<[2], [1], [1], [2], [0, 0, 0, 1, 1, 2], [0], [0]>} : vector<4x8x8xbf16>, vector<4x8x32xbf16>, vector<4x8x32xf32> -> vector<4x8x32xf32>
    %36 = tpu.transpose %35, [1, 0, 2] : vector<4x8x32xf32> -> vector<8x4x32xf32>
    %37 = vector.shape_cast %36 : vector<8x4x32xf32> to vector<8x128xf32>
    %c0_25 = arith.constant 0 : index
    %c0_26 = arith.constant 0 : index
    %c0_27 = arith.constant 0 : index
    %38 = vector.load %arg6[%c0_25, %c0_26, %c0_27] : memref<1x8x128xf32, #tpu.memory_space<vmem>>, vector<1x8x128xf32>
    %39 = vector.shape_cast %38 : vector<1x8x128xf32> to vector<8x128xf32>
    %40 = vector.shape_cast %37 : vector<8x128xf32> to vector<1x8x128xf32>
    tpu.vector_store %arg6[%c0_25, %c0_26, %c0_27], %40 {strides = array<i32>} : memref<1x8x128xf32, #tpu.memory_space<vmem>>, vector<1x8x128xf32>,
    return
  }
  func.func @transform_0(%arg0: i32, %arg1: i32) -> (i32, i32, i32, i32) {
    %c0_i32 = arith.constant 0 : i32
    %c0_i32_0 = arith.constant 0 : i32
    %c0_i32_1 = arith.constant 0 : i32
    return %arg0, %c0_i32, %arg1, %c0_i32_0 : i32, i32, i32, i32
  }
  func.func @transform_1(%arg0: i32, %arg1: i32) -> (i32, i32, i32, i32) {
    %c0_i32 = arith.constant 0 : i32
    %c0_i32_0 = arith.constant 0 : i32
    %c0_i32_1 = arith.constant 0 : i32
    %c0_i32_2 = arith.constant 0 : i32
    return %arg0, %c0_i32, %c0_i32_0, %c0_i32_1 : i32, i32, i32, i32
  }
  func.func @transform_2(%arg0: i32, %arg1: i32) -> (i32, i32, i32, i32) {
    %c0_i32 = arith.constant 0 : i32
    %c0_i32_0 = arith.constant 0 : i32
    %c0_i32_1 = arith.constant 0 : i32
    %c0_i32_2 = arith.constant 0 : i32
    return %arg0, %c0_i32, %c0_i32_0, %c0_i32_1 : i32, i32, i32, i32
  }
  func.func @transform_3(%arg0: i32, %arg1: i32) -> (i32, i32, i32) {
    %c0_i32 = arith.constant 0 : i32
    %c0_i32_0 = arith.constant 0 : i32
    %c0_i32_1 = arith.constant 0 : i32
    return %arg0, %c0_i32, %c0_i32_0 : i32, i32, i32
  }
  func.func @transform_4(%arg0: i32, %arg1: i32) -> (i32, i32, i32) {
    %c0_i32 = arith.constant 0 : i32
    %c0_i32_0 = arith.constant 0 : i32
    return %arg0, %arg1, %c0_i32 : i32, i32, i32
  }
  func.func @transform_5(%arg0: i32, %arg1: i32) -> (i32, i32, i32, i32) {
    %c0_i32 = arith.constant 0 : i32
    %c0_i32_0 = arith.constant 0 : i32
    %c0_i32_1 = arith.constant 0 : i32
    return %arg0, %c0_i32, %arg1, %c0_i32_0 : i32, i32, i32, i32
  }
}

</mosaic_0001>

<llo_original>
// kernel: tpu_custom_call.1
$region0: #{tpu_custom_call.1}
  #allocation0 [shape = 'u32[]', space=smem, size = 0x4, offset = 0x4, fixed_abs, tag = 'smem constant byte address 0x4 - core index']
  #allocation1 [shape = 'u32[144,128]{1,0:T(1,128)}', space=vmem, size = 0x12000, scoped, tag = 'internal scratch']
  %s0 = inlined_call_operand.hbm [shape: f32[2,4,8,32], index: 0, kind: input, shape index: {}]
  %s1 = inlined_call_operand.hbm [shape: f32[2,4,8,32], index: 1, kind: input, shape index: {}]
  %s2 = inlined_call_operand.hbm [shape: f32[2,4,8,32], index: 2, kind: input, shape index: {}]
  %s3 = inlined_call_operand.vmem [shape: f32[2,1,8], index: 3, kind: input, shape index: {}]
  %s4 = inlined_call_operand.hbm [shape: f32[2,8,128], index: 4, kind: output, shape index: {0}]
  %s5 = inlined_call_operand.hbm [shape: f32[2,4,8,8], index: 5, kind: output, shape index: {1}]
  %6 = xla_tuple %s4, %s5
  %s7 = sld [smem:[#allocation0]]
  $region69: #{tpu_custom_call.1} parent=0
    _
  %s9 = ssub.s32 1, %s7
  %s10 = scalar_select 0, %s9, %s7
  $region1: #{tpu_custom_call.1} parent=0
    #allocation2 [shape = 'u8[32768]{0}', space=vmem, size = 0x8000, scoped, tag = 'input window, operand 0']
    #allocation3 [shape = 's32[2]{0}', space=sflag, size = 0x8, scoped, tag = 'scoped memory for tpu_custom_call.1']
    #allocation4 [shape = 's32[2]{0}', space=sflag, size = 0x8, scoped, tag = 'scoped memory for tpu_custom_call.1']
    #allocation5 [shape = 'u8[32768]{0}', space=vmem, size = 0x8000, scoped, tag = 'input window, operand 1']
    #allocation6 [shape = 's32[2]{0}', space=sflag, size = 0x8, scoped, tag = 'scoped memory for tpu_custom_call.1']
    #allocation7 [shape = 'u8[32768]{0}', space=vmem, size = 0x8000, scoped, tag = 'input window, operand 2']
    #allocation8 [shape = 'u8[8192]{0}', space=vmem, size = 0x2000, scoped, tag = 'output window, operand 0']
    #allocation9 [shape = 'u8[32768]{0}', space=vmem, size = 0x8000, scoped, tag = 'output window, operand 1']
    #allocation10 [shape = 's32[2]{0}', space=sflag, size = 0x8, scoped, tag = 'scoped memory for tpu_custom_call.1']
    %11 = vsyncpa [#allocation3], 0
    %s12 = scalar_lea.sflag [#allocation3], 1
    %13 = vsyncpa %s12, 0
    %14 = vsyncpa [#allocation6], 0
    %s15 = scalar_lea.sflag [#allocation6], 1
    %16 = vsyncpa %s15, 0
    %17 = vsyncpa [#allocation4], 0
    %s18 = scalar_lea.sflag [#allocation4], 1
    %19 = vsyncpa %s18, 0
    %20 = vsyncpa [#allocation10], 0
    %s21 = scalar_lea.sflag [#allocation10], 1
    %22 = vsyncpa %s21, 0
    loop: start=0, step=1, limit=4
    $region2: #{tpu_custom_call.1} parent=1 // loop_pre_header
      _
    $region3: #{tpu_custom_call.1} parent=1 // loop_header
      %s24 = sphi 0, %s28
      %p25 = scmp.ge.s32.totalorder %s24, 4
      %s31 = sphi 0, %s43
      %s32 = sphi 0, %s39
      %s33 = sphi 0, %s31
      %s34 = sphi 0, %s32
      %s35 = sphi 0, %s33
      %s36 = sphi 0, %s34
      %s48 = sphi 0, %s50
      %s51 = sphi 0, %s48
      %s52 = sphi 0, %s51
      %s68 = sphi 0, %s52
      %s74 = sphi 0, %s76
      %s77 = sphi 0, %s74
      %s78 = sphi 0, %s77
      %s94 = sphi 0, %s78
      %s100 = sphi 0, %s102
      %s103 = sphi 0, %s100
      %s104 = sphi 0, %s103
      %s120 = sphi 0, %s104
      %s126 = sphi 0, %s128
      %s129 = sphi 0, %s126
      %s130 = sphi 0, %s129
      %s146 = sphi 0, %s130
      %s154 = sphi 0, %s156
      %s157 = sphi 0, %s154
      %s158 = sphi 0, %s157
      %s174 = sphi 0, %s158
      %s182 = sphi 0, %s184
      %s185 = sphi 0, %s182
      %s186 = sphi 0, %s185
      %s202 = sphi 0, %s186
    $region4: #{tpu_custom_call.1} parent=1 // loop_header_branch
      %27 = sbr.rel (%p25) target = $region8
    $region5: #{tpu_custom_call.1} parent=1 // loop_body
      %s29 = ssub.s32 %s24, 1
      %s30 = ssub.s32 %s24, 2
      %s37 = sadd.s32 1, %s32
      %p38 = scmp.ge.s32.totalorder %s37, 1
      %s39 = scalar_select %p38, 0, %s37
      %s40 = sadd.s32 1, %s31
      %s41 = scalar_select %p38, %s40, %s31
      %p42 = scmp.ge.s32.totalorder %s41, 2
      %s43 = scalar_select %p42, 0, %s41
      %s44 = ssub.s32 %s31, %s43
      %s45 = ssub.s32 %s32, %s39
      %s46 = sor.u32 %s44, %s45
      %p47 = scmp.eq.s32.totalorder %s46, 0
      %s49 = sadd.s32 %s48, 1
      %s50 = scalar_select %p47, %s48, %s49
      %p53 = pneg %p47
      %p54 = scmp.eq.s32.totalorder %s24, 1
      %p55 = por %p53, %p54
      %p56 = scmp.ne.s32.totalorder %s48, %s51
      %p57 = scmp.eq.s32.totalorder %s24, 0
      %p58 = por %p56, %p57
      %p59 = scmp.ne.s32.totalorder %s48, %s51
      %p60 = scmp.eq.s32.totalorder %s29, 1
      %p61 = por %p59, %p60
      %p62 = scmp.ne.s32.totalorder %s51, %s52
      %p63 = scmp.eq.s32.totalorder %s29, 0
      %p64 = por %p62, %p63
      %p65 = scmp.ne.s32.totalorder %s51, %s52
      %p66 = scmp.eq.s32.totalorder %s30, 1
      %p67 = por %p65, %p66
      %p69 = scmp.ne.s32.totalorder %s52, %s68
      %p70 = scmp.eq.s32.totalorder %s30, 0
      %p71 = por %p69, %p70
      %s72 = ssub.s32 %s31, %s43
      %p73 = scmp.eq.s32.totalorder %s72, 0
      %s75 = sadd.s32 %s74, 1
      %s76 = scalar_select %p73, %s74, %s75
      %p79 = pneg %p73
      %p80 = scmp.eq.s32.totalorder %s24, 1
      %p81 = por %p79, %p80
      %p82 = scmp.ne.s32.totalorder %s74, %s77
      %p83 = scmp.eq.s32.totalorder %s24, 0
      %p84 = por %p82, %p83
      %p85 = scmp.ne.s32.totalorder %s74, %s77
      %p86 = scmp.eq.s32.totalorder %s29, 1
      %p87 = por %p85, %p86
      %p88 = scmp.ne.s32.totalorder %s77, %s78
      %p89 = scmp.eq.s32.totalorder %s29, 0
      %p90 = por %p88, %p89
      %p91 = scmp.ne.s32.totalorder %s77, %s78
      %p92 = scmp.eq.s32.totalorder %s30, 1
      %p93 = por %p91, %p92
      %p95 = scmp.ne.s32.totalorder %s78, %s94
      %p96 = scmp.eq.s32.totalorder %s30, 0
      %p97 = por %p95, %p96
      %s98 = ssub.s32 %s31, %s43
      %p99 = scmp.eq.s32.totalorder %s98, 0
      %s101 = sadd.s32 %s100, 1
      %s102 = scalar_select %p99, %s100, %s101
      %p105 = pneg %p99
      %p106 = scmp.eq.s32.totalorder %s24, 1
      %p107 = por %p105, %p106
      %p108 = scmp.ne.s32.totalorder %s100, %s103
      %p109 = scmp.eq.s32.totalorder %s24, 0
      %p110 = por %p108, %p109
      %p111 = scmp.ne.s32.totalorder %s100, %s103
      %p112 = scmp.eq.s32.totalorder %s29, 1
      %p113 = por %p111, %p112
      %p114 = scmp.ne.s32.totalorder %s103, %s104
      %p115 = scmp.eq.s32.totalorder %s29, 0
      %p116 = por %p114, %p115
      %p117 = scmp.ne.s32.totalorder %s103, %s104
      %p118 = scmp.eq.s32.totalorder %s30, 1
      %p119 = por %p117, %p118
      %p121 = scmp.ne.s32.totalorder %s104, %s120
      %p122 = scmp.eq.s32.totalorder %s30, 0
      %p123 = por %p121, %p122
      %s124 = ssub.s32 %s31, %s43
      %p125 = scmp.eq.s32.totalorder %s124, 0
      %s127 = sadd.s32 %s126, 1
      %s128 = scalar_select %p125, %s126, %s127
      %p131 = pneg %p125
      %p132 = scmp.eq.s32.totalorder %s24, 1
      %p133 = por %p131, %p132
      %p134 = scmp.ne.s32.totalorder %s126, %s129
      %p135 = scmp.eq.s32.totalorder %s24, 0
      %p136 = por %p134, %p135
      %p137 = scmp.ne.s32.totalorder %s126, %s129
      %p138 = scmp.eq.s32.totalorder %s29, 1
      %p139 = por %p137, %p138
      %p140 = scmp.ne.s32.totalorder %s129, %s130
      %p141 = scmp.eq.s32.totalorder %s29, 0
      %p142 = por %p140, %p141
      %p143 = scmp.ne.s32.totalorder %s129, %s130
      %p144 = scmp.eq.s32.totalorder %s30, 1
      %p145 = por %p143, %p144
      %p147 = scmp.ne.s32.totalorder %s130, %s146
      %p148 = scmp.eq.s32.totalorder %s30, 0
      %p149 = por %p147, %p148
      %s150 = ssub.s32 %s31, %s43
      %s151 = ssub.s32 %s32, %s39
      %s152 = sor.u32 %s150, %s151
      %p153 = scmp.eq.s32.totalorder %s152, 0
      %s155 = sadd.s32 %s154, 1
      %s156 = scalar_select %p153, %s154, %s155
      %p159 = pneg %p153
      %p160 = scmp.eq.s32.totalorder %s24, 1
      %p161 = por %p159, %p160
      %p162 = scmp.ne.s32.totalorder %s154, %s157
      %p163 = scmp.eq.s32.totalorder %s24, 0
      %p164 = por %p162, %p163
      %p165 = scmp.ne.s32.totalorder %s154, %s157
      %p166 = scmp.eq.s32.totalorder %s29, 1
      %p167 = por %p165, %p166
      %p168 = scmp.ne.s32.totalorder %s157, %s158
      %p169 = scmp.eq.s32.totalorder %s29, 0
      %p170 = por %p168, %p169
      %p171 = scmp.ne.s32.totalorder %s157, %s158
      %p172 = scmp.eq.s32.totalorder %s30, 1
      %p173 = por %p171, %p172
      %p175 = scmp.ne.s32.totalorder %s158, %s174
      %p176 = scmp.eq.s32.totalorder %s30, 0
      %p177 = por %p175, %p176
      %s178 = ssub.s32 %s31, %s43
      %s179 = ssub.s32 %s32, %s39
      %s180 = sor.u32 %s178, %s179
      %p181 = scmp.eq.s32.totalorder %s180, 0
      %s183 = sadd.s32 %s182, 1
      %s184 = scalar_select %p181, %s182, %s183
      %p187 = pneg %p181
      %p188 = scmp.eq.s32.totalorder %s24, 1
      %p189 = por %p187, %p188
      %p190 = scmp.ne.s32.totalorder %s182, %s185
      %p191 = scmp.eq.s32.totalorder %s24, 0
      %p192 = por %p190, %p191
      %p193 = scmp.ne.s32.totalorder %s182, %s185
      %p194 = scmp.eq.s32.totalorder %s29, 1
      %p195 = por %p193, %p194
      %p196 = scmp.ne.s32.totalorder %s185, %s186
      %p197 = scmp.eq.s32.totalorder %s29, 0
      %p198 = por %p196, %p197
      %p199 = scmp.ne.s32.totalorder %s185, %s186
      %p200 = scmp.eq.s32.totalorder %s30, 1
      %p201 = por %p199, %p200
      %p203 = scmp.ne.s32.totalorder %s186, %s202
      %p204 = scmp.eq.s32.totalorder %s30, 0
      %p205 = por %p203, %p204
      %p206 = scmp.le.s32.totalorder 1, %s24
      %p207 = scmp.lt.s32.totalorder %s24, 3
      %p208 = pnand %p206, %p207
      %p209 = pneg %p208
      // Predicated region
      $region9: #{tpu_custom_call.1} parent=5 // pred_check
        _
      $region10: #{tpu_custom_call.1} parent=5 // pred_check_branch
        %211 = sbr.rel (%p208) target = $region12
      $region11: #{tpu_custom_call.1} parent=5 // pred_region
        %s212 = ssub.s32 %s24, 1
      $region12: #{tpu_custom_call.1} parent=5 // pred_fallthru
        _
      %p213 = scmp.lt.s32.totalorder %s24, 2
      // Predicated region
      $region13: #{tpu_custom_call.1} parent=5 // pred_check
        %p214 = pneg %p213
      $region14: #{tpu_custom_call.1} parent=5 // pred_check_branch
        %216 = sbr.rel (%p214) target = $region16
      $region15: #{tpu_custom_call.1} parent=5 // pred_region
        // Predicated region
        $region17: #{tpu_custom_call.1} parent=15 // pred_check
          %p217 = pneg %p58
        $region18: #{tpu_custom_call.1} parent=15 // pred_check_branch
          %219 = sbr.rel (%p217) target = $region20
        $region19: #{tpu_custom_call.1} parent=15 // pred_region
          %s220 = sand.u32 %s48, 1
          %s221 = scalar_lea.sflag [#allocation3], %s220
          %s222 = sand.u32 %s48, 1
          %s223 = smul.addr %s222, 32
          %s224 = scalar_lea.vmem [#allocation2], %s223
          %s226 = ssub.s32 512, 512
          %227 = vsyncadd %s221, %s226
          %s228 = smul.addr %s31, 4
          %s229 = sadd.s32 %s32, %s228
          %s230 = smul.addr %s229, 128
          %s231 = scalar_lea.hbm %s0, %s230
          %s232 = sshll.u32 %s224, 4
          %s233 = int_to_ptr.vmem [resolvable:$true] %s232
          %238 = dma.hbm_to_vmem [thread:$0]  %s231, 512, %s233, %s221, 128, 128, 8
        $region20: #{tpu_custom_call.1} parent=15 // pred_fallthru
          _
        // Predicated region
        $region21: #{tpu_custom_call.1} parent=15 // pred_check
          %p239 = pneg %p84
        $region22: #{tpu_custom_call.1} parent=15 // pred_check_branch
          %241 = sbr.rel (%p239) target = $region24
        $region23: #{tpu_custom_call.1} parent=15 // pred_region
          %s242 = sand.u32 %s24, 1
          %s243 = scalar_lea.sflag [#allocation6], %s242
          %s244 = sand.u32 %s74, 1
          %s245 = smul.addr %s244, 32
          %s246 = scalar_lea.vmem [#allocation5], %s245
          %s248 = ssub.s32 512, 512
          %249 = vsyncadd %s243, %s248
          %s250 = smul.addr %s31, 4
          %s251 = smul.addr %s250, 128
          %s252 = scalar_lea.hbm %s1, %s251
          %s253 = sshll.u32 %s246, 4
          %s254 = int_to_ptr.vmem [resolvable:$true] %s253
          %259 = dma.hbm_to_vmem [thread:$0]  %s252, 512, %s254, %s243, 128, 128, 8
        $region24: #{tpu_custom_call.1} parent=15 // pred_fallthru
          _
        // Predicated region
        $region25: #{tpu_custom_call.1} parent=15 // pred_check
          %p260 = pneg %p110
        $region26: #{tpu_custom_call.1} parent=15 // pred_check_branch
          %262 = sbr.rel (%p260) target = $region28
        $region27: #{tpu_custom_call.1} parent=15 // pred_region
          %s263 = sand.u32 %s24, 1
          %s264 = scalar_lea.sflag [#allocation6], %s263
          %s265 = sand.u32 %s100, 1
          %s266 = smul.addr %s265, 32
          %s267 = scalar_lea.vmem [#allocation7], %s266
          %s269 = ssub.s32 512, 512
          %270 = vsyncadd %s264, %s269
          %s271 = smul.addr %s31, 4
          %s272 = smul.addr %s271, 128
          %s273 = scalar_lea.hbm %s2, %s272
          %s274 = sshll.u32 %s267, 4
          %s275 = int_to_ptr.vmem [resolvable:$true] %s274
          %280 = dma.hbm_to_vmem [thread:$0]  %s273, 512, %s275, %s264, 128, 128, 8
        $region28: #{tpu_custom_call.1} parent=15 // pred_fallthru
          _
        // Predicated region
        $region29: #{tpu_custom_call.1} parent=15 // pred_check
          %p281 = pneg %p136
        $region30: #{tpu_custom_call.1} parent=15 // pred_check_branch
          %283 = sbr.rel (%p281) target = $region32
        $region31: #{tpu_custom_call.1} parent=15 // pred_region
          %p284 = scmp.lt.s32.totalorder %s31, 1
          %s285 = scalar_select %p284, %s31, 1
          %s286 = scalar_lea.vmem %s3, %s285
        $region32: #{tpu_custom_call.1} parent=15 // pred_fallthru
          _
      $region16: #{tpu_custom_call.1} parent=5 // pred_fallthru
        _
      %p287 = scmp.le.s32.totalorder 1, %s24
      %p288 = scmp.lt.s32.totalorder %s24, 3
      %p289 = pnand %p287, %p288
      %p290 = pneg %p289
      // Predicated region
      $region33: #{tpu_custom_call.1} parent=5 // pred_check
        _
      $region34: #{tpu_custom_call.1} parent=5 // pred_check_branch
        %292 = sbr.rel (%p289) target = $region36
      $region35: #{tpu_custom_call.1} parent=5 // pred_region
        %s293 = ssub.s32 %s24, 1
        %s294 = sand.u32 %s51, 1
        %s295 = scalar_lea.sflag [#allocation3], %s294
        %s296 = sand.u32 %s51, 1
        %s297 = smul.addr %s296, 32
        %s298 = scalar_lea.vmem [#allocation2], %s297
        // Predicated region
        $region37: #{tpu_custom_call.1} parent=35 // pred_check
          %p299 = pneg %p64
        $region38: #{tpu_custom_call.1} parent=35 // pred_check_branch
          %301 = sbr.rel (%p299) target = $region40
        $region39: #{tpu_custom_call.1} parent=35 // pred_region
          %302 = dma.done %s295, 512
        $region40: #{tpu_custom_call.1} parent=35 // pred_fallthru
          _
        %s303 = sand.u32 %s29, 1
        %s304 = scalar_lea.sflag [#allocation6], %s303
        %s305 = sand.u32 %s77, 1
        %s306 = smul.addr %s305, 32
        %s307 = scalar_lea.vmem [#allocation5], %s306
        // Predicated region
        $region41: #{tpu_custom_call.1} parent=35 // pred_check
          %p308 = pneg %p90
        $region42: #{tpu_custom_call.1} parent=35 // pred_check_branch
          %310 = sbr.rel (%p308) target = $region44
        $region43: #{tpu_custom_call.1} parent=35 // pred_region
          %311 = dma.done %s304, 512
        $region44: #{tpu_custom_call.1} parent=35 // pred_fallthru
          _
        %s312 = sand.u32 %s29, 1
        %s313 = scalar_lea.sflag [#allocation6], %s312
        %s314 = sand.u32 %s103, 1
        %s315 = smul.addr %s314, 32
        %s316 = scalar_lea.vmem [#allocation7], %s315
        // Predicated region
        $region45: #{tpu_custom_call.1} parent=35 // pred_check
          %p317 = pneg %p116
        $region46: #{tpu_custom_call.1} parent=35 // pred_check_branch
          %319 = sbr.rel (%p317) target = $region48
        $region47: #{tpu_custom_call.1} parent=35 // pred_region
          %320 = dma.done %s313, 512
        $region48: #{tpu_custom_call.1} parent=35 // pred_fallthru
          _
        %s321 = sand.u32 %s51, 1
        %s322 = scalar_lea.sflag [#allocation3], %s321
        %s323 = sand.u32 %s51, 1
        %s324 = smul.addr %s323, 32
        %s325 = scalar_lea.vmem [#allocation2], %s324
        %p326 = pneg %p64
        %p327 = pneg %p61
        %s328 = sand.u32 %s29, 1
        %s329 = scalar_lea.sflag [#allocation6], %s328
        %s330 = sand.u32 %s77, 1
        %s331 = smul.addr %s330, 32
        %s332 = scalar_lea.vmem [#allocation5], %s331
        %p333 = pneg %p90
        %p334 = pneg %p87
        %s335 = sand.u32 %s29, 1
        %s336 = scalar_lea.sflag [#allocation6], %s335
        %s337 = sand.u32 %s103, 1
        %s338 = smul.addr %s337, 32
        %s339 = scalar_lea.vmem [#allocation7], %s338
        %p340 = pneg %p116
        %p341 = pneg %p113
        %p342 = scmp.lt.s32.totalorder %s33, 1
        %s343 = scalar_select %p342, %s33, 1
        %s344 = scalar_lea.vmem %s3, %s343
        %p345 = pneg %p142
        %p346 = pneg %p139
        %p347 = pneg %p170
        %p348 = pneg %p167
        %s349 = sand.u32 %s157, 1
        %s350 = scalar_lea.sflag [#allocation4], %s349
        %s351 = sand.u32 %s157, 1
        %s352 = smul.addr %s351, 8
        %s353 = scalar_lea.vmem [#allocation8], %s352
        %p354 = pneg %p198
        %p355 = pneg %p195
        %s356 = sand.u32 %s185, 1
        %s357 = scalar_lea.sflag [#allocation10], %s356
        %s358 = sand.u32 %s185, 1
        %s359 = smul.addr %s358, 32
        %s360 = scalar_lea.vmem [#allocation9], %s359
        %p361 = scmp.lt.s32.totalorder %s33, 1
        %s362 = scalar_select %p361, %s33, 1
        %s363 = scalar_lea.vmem %s3, %s362
        %v365 = vld [vmem:[%s298] sm:$0xff]
        %v366 = vld [vmem:[%s298 + $0x8] sm:$0xff]
        %v367 = vld [vmem:[%s298 + $0x10] sm:$0xff]
        %v368 = vld [vmem:[%s298 + $0x18] sm:$0xff]
        %v369 = vmul.f32 %v365, 0.17677669
        %v370 = vmul.f32 %v366, 0.17677669
        %v371 = vmul.f32 %v367, 0.17677669
        %v372 = vmul.f32 %v368, 0.17677669
        %v373 = vpack.c.bf16 %v369, %v369
        %v374 = vpack.c.bf16 %v370, %v370
        %v375 = vpack.c.bf16 %v371, %v371
        %v376 = vpack.c.bf16 %v372, %v372
        %v377 = vld [vmem:[%s307] sm:$0xff]
        %v378 = vld [vmem:[%s307 + $0x8] sm:$0xff]
        %v379 = vld [vmem:[%s307 + $0x10] sm:$0xff]
        %v380 = vld [vmem:[%s307 + $0x18] sm:$0xff]
        %v381 = vpack.c.bf16 %v377, %v377
        %v382 = vpack.c.bf16 %v378, %v378
        %v383 = vpack.c.bf16 %v379, %v379
        %v384 = vpack.c.bf16 %v380, %v380
        %v385 = vld [vmem:[%s316] sm:$0xff]
        %v386 = vld [vmem:[%s316 + $0x8] sm:$0xff]
        %v387 = vld [vmem:[%s316 + $0x10] sm:$0xff]
        %v388 = vld [vmem:[%s316 + $0x18] sm:$0xff]
        %v389 = vpack.c.bf16 %v385, %v385
        %v390 = vpack.c.bf16 %v386, %v386
        %v391 = vpack.c.bf16 %v387, %v387
        %v392 = vpack.c.bf16 %v388, %v388
        %vm393 = vcmask 261120
        %v395 = vsel %vm393, %v373, 0
        %v398 = vsel %vm393, %v381, 0
        %400 = vmatprep.subr.bf16.mxu0 0
        %401 = vmatpush1.bf16.xpose.msra.mxu0 0
        %402 = vmatprep.subr.bf16.mxu0 0
        %403 = vmatpush1.bf16.xpose.msra.mxu0 0
        %404 = vmatprep.subr.bf16.mxu0 0
        %405 = vmatpush1.bf16.xpose.msra.mxu0 0
        %406 = vmatprep.subr.bf16.mxu0 0
        %407 = vmatpush1.bf16.xpose.msra.mxu0 0
        %408 = vmatprep.subr.bf16.mxu0 0
        %409 = vmatpush1.bf16.xpose.msra.mxu0 0
        %410 = vmatprep.subr.bf16.mxu0 0
        %411 = vmatpush1.bf16.xpose.msra.mxu0 0
        %412 = vmatprep.subr.bf16.mxu0 0
        %413 = vmatpush1.bf16.xpose.msra.mxu0 0
        %414 = vmatprep.subr.bf16.mxu0 0
        %415 = vmatpush1.bf16.xpose.msra.mxu0 %v398
        %416 = vmatprep.subr.bf16.mxu0 0
        %417 = vmatpush2.bf16.xpose.msra.mxu0 0
        %418 = vmatprep.subr.bf16.mxu0 0
        %419 = vmatpush2.bf16.xpose.msra.mxu0 0
        %420 = vmatprep.subr.bf16.mxu0 0
        %421 = vmatpush2.bf16.xpose.msra.mxu0 0
        %422 = vmatprep.subr.bf16.mxu0 0
        %423 = vmatpush2.bf16.xpose.msra.mxu0 0
        %424 = vmatprep.subr.bf16.mxu0 0
        %425 = vmatpush2.bf16.xpose.msra.mxu0 0
        %426 = vmatprep.subr.bf16.mxu0 0
        %427 = vmatpush2.bf16.xpose.msra.mxu0 0
        %428 = vmatprep.subr.bf16.mxu0 0
        %429 = vmatpush2.bf16.xpose.msra.mxu0 0
        %430 = vmatprep.subr.bf16.mxu0 0
        %431 = vmatpush2.bf16.xpose.msra.mxu0 0
        %432 = vmatprep.mubr.bf16.mxu0 0
        %433 = vmatmul.mubr.bf16.gmra.mxu0 %v395
        %v434 = vpop.f32.mrf.mxu0
        %v435 = vadd.f32 0.0, %v434
        %v436 = vpop.f32.mrf.mxu0
        %v437 = vpop.f32.mrf.mxu0
        %v438 = vpop.f32.mrf.mxu0
        %439 = vdwg.mxu0
        %v441 = vsel %vm393, %v374, 0
        %v444 = vsel %vm393, %v382, 0
        %446 = vmatprep.subr.bf16.mxu0 0
        %447 = vmatpush1.bf16.xpose.msra.mxu0 0
        %448 = vmatprep.subr.bf16.mxu0 0
        %449 = vmatpush1.bf16.xpose.msra.mxu0 0
        %450 = vmatprep.subr.bf16.mxu0 0
        %451 = vmatpush1.bf16.xpose.msra.mxu0 0
        %452 = vmatprep.subr.bf16.mxu0 0
        %453 = vmatpush1.bf16.xpose.msra.mxu0 0
        %454 = vmatprep.subr.bf16.mxu0 0
        %455 = vmatpush1.bf16.xpose.msra.mxu0 0
        %456 = vmatprep.subr.bf16.mxu0 0
        %457 = vmatpush1.bf16.xpose.msra.mxu0 0
        %458 = vmatprep.subr.bf16.mxu0 0
        %459 = vmatpush1.bf16.xpose.msra.mxu0 0
        %460 = vmatprep.subr.bf16.mxu0 0
        %461 = vmatpush1.bf16.xpose.msra.mxu0 %v444
        %462 = vmatprep.subr.bf16.mxu0 0
        %463 = vmatpush2.bf16.xpose.msra.mxu0 0
        %464 = vmatprep.subr.bf16.mxu0 0
        %465 = vmatpush2.bf16.xpose.msra.mxu0 0
        %466 = vmatprep.subr.bf16.mxu0 0
        %467 = vmatpush2.bf16.xpose.msra.mxu0 0
        %468 = vmatprep.subr.bf16.mxu0 0
        %469 = vmatpush2.bf16.xpose.msra.mxu0 0
        %470 = vmatprep.subr.bf16.mxu0 0
        %471 = vmatpush2.bf16.xpose.msra.mxu0 0
        %472 = vmatprep.subr.bf16.mxu0 0
        %473 = vmatpush2.bf16.xpose.msra.mxu0 0
        %474 = vmatprep.subr.bf16.mxu0 0
        %475 = vmatpush2.bf16.xpose.msra.mxu0 0
        %476 = vmatprep.subr.bf16.mxu0 0
        %477 = vmatpush2.bf16.xpose.msra.mxu0 0
        %478 = vmatprep.mubr.bf16.mxu0 0
        %479 = vmatmul.mubr.bf16.gmra.mxu0 %v441
        %v480 = vpop.f32.mrf.mxu0
        %v481 = vadd.f32 0.0, %v480
        %v482 = vpop.f32.mrf.mxu0
        %v483 = vpop.f32.mrf.mxu0
        %v484 = vpop.f32.mrf.mxu0
        %485 = vdwg.mxu0
        %v487 = vsel %vm393, %v375, 0
        %v490 = vsel %vm393, %v383, 0
        %492 = vmatprep.subr.bf16.mxu0 0
        %493 = vmatpush1.bf16.xpose.msra.mxu0 0
        %494 = vmatprep.subr.bf16.mxu0 0
        %495 = vmatpush1.bf16.xpose.msra.mxu0 0
        %496 = vmatprep.subr.bf16.mxu0 0
        %497 = vmatpush1.bf16.xpose.msra.mxu0 0
        %498 = vmatprep.subr.bf16.mxu0 0
        %499 = vmatpush1.bf16.xpose.msra.mxu0 0
        %500 = vmatprep.subr.bf16.mxu0 0
        %501 = vmatpush1.bf16.xpose.msra.mxu0 0
        %502 = vmatprep.subr.bf16.mxu0 0
        %503 = vmatpush1.bf16.xpose.msra.mxu0 0
        %504 = vmatprep.subr.bf16.mxu0 0
        %505 = vmatpush1.bf16.xpose.msra.mxu0 0
        %506 = vmatprep.subr.bf16.mxu0 0
        %507 = vmatpush1.bf16.xpose.msra.mxu0 %v490
        %508 = vmatprep.subr.bf16.mxu0 0
        %509 = vmatpush2.bf16.xpose.msra.mxu0 0
        %510 = vmatprep.subr.bf16.mxu0 0
        %511 = vmatpush2.bf16.xpose.msra.mxu0 0
        %512 = vmatprep.subr.bf16.mxu0 0
        %513 = vmatpush2.bf16.xpose.msra.mxu0 0
        %514 = vmatprep.subr.bf16.mxu0 0
        %515 = vmatpush2.bf16.xpose.msra.mxu0 0
        %516 = vmatprep.subr.bf16.mxu0 0
        %517 = vmatpush2.bf16.xpose.msra.mxu0 0
        %518 = vmatprep.subr.bf16.mxu0 0
        %519 = vmatpush2.bf16.xpose.msra.mxu0 0
        %520 = vmatprep.subr.bf16.mxu0 0
        %521 = vmatpush2.bf16.xpose.msra.mxu0 0
        %522 = vmatprep.subr.bf16.mxu0 0
        %523 = vmatpush2.bf16.xpose.msra.mxu0 0
        %524 = vmatprep.mubr.bf16.mxu0 0
        %525 = vmatmul.mubr.bf16.gmra.mxu0 %v487
        %v526 = vpop.f32.mrf.mxu0
        %v527 = vadd.f32 0.0, %v526
        %v528 = vpop.f32.mrf.mxu0
        %v529 = vpop.f32.mrf.mxu0
        %v530 = vpop.f32.mrf.mxu0
        %531 = vdwg.mxu0
        %v533 = vsel %vm393, %v376, 0
        %v536 = vsel %vm393, %v384, 0
        %538 = vmatprep.subr.bf16.mxu0 0
        %539 = vmatpush1.bf16.xpose.msra.mxu0 0
        %540 = vmatprep.subr.bf16.mxu0 0
        %541 = vmatpush1.bf16.xpose.msra.mxu0 0
        %542 = vmatprep.subr.bf16.mxu0 0
        %543 = vmatpush1.bf16.xpose.msra.mxu0 0
        %544 = vmatprep.subr.bf16.mxu0 0
        %545 = vmatpush1.bf16.xpose.msra.mxu0 0
        %546 = vmatprep.subr.bf16.mxu0 0
        %547 = vmatpush1.bf16.xpose.msra.mxu0 0
        %548 = vmatprep.subr.bf16.mxu0 0
        %549 = vmatpush1.bf16.xpose.msra.mxu0 0
        %550 = vmatprep.subr.bf16.mxu0 0
        %551 = vmatpush1.bf16.xpose.msra.mxu0 0
        %552 = vmatprep.subr.bf16.mxu0 0
        %553 = vmatpush1.bf16.xpose.msra.mxu0 %v536
        %554 = vmatprep.subr.bf16.mxu0 0
        %555 = vmatpush2.bf16.xpose.msra.mxu0 0
        %556 = vmatprep.subr.bf16.mxu0 0
        %557 = vmatpush2.bf16.xpose.msra.mxu0 0
        %558 = vmatprep.subr.bf16.mxu0 0
        %559 = vmatpush2.bf16.xpose.msra.mxu0 0
        %560 = vmatprep.subr.bf16.mxu0 0
        %561 = vmatpush2.bf16.xpose.msra.mxu0 0
        %562 = vmatprep.subr.bf16.mxu0 0
        %563 = vmatpush2.bf16.xpose.msra.mxu0 0
        %564 = vmatprep.subr.bf16.mxu0 0
        %565 = vmatpush2.bf16.xpose.msra.mxu0 0
        %566 = vmatprep.subr.bf16.mxu0 0
        %567 = vmatpush2.bf16.xpose.msra.mxu0 0
        %568 = vmatprep.subr.bf16.mxu0 0
        %569 = vmatpush2.bf16.xpose.msra.mxu0 0
        %570 = vmatprep.mubr.bf16.mxu0 0
        %571 = vmatmul.mubr.bf16.gmra.mxu0 %v533
        %v572 = vpop.f32.mrf.mxu0
        %v573 = vadd.f32 0.0, %v572
        %v574 = vpop.f32.mrf.mxu0
        %v575 = vpop.f32.mrf.mxu0
        %v576 = vpop.f32.mrf.mxu0
        %577 = vdwg.mxu0
        %v578 = vld [vmem:[%s363] sm:$0x1]
        %vm579 = vcmp.eq.f32.partialorder %v578, 0.0
        %v580 = vsel %vm579, 1, 0
        %v581 = vlaneseq
        %v582 = vshrl.u32 %v581, 7
        %v583 = vsub.s32 0, %v582
        %v584 = vrot.slane %v580, %v583
        %vm585 = vcmp.eq.s32.totalorder %v584, 1
        %v586 = vsel %vm585, -1e+09, %v435
        %v587 = vsel %vm585, -1e+09, %v481
        %v588 = vsel %vm585, -1e+09, %v527
        %v589 = vsel %vm585, -1e+09, %v573
        %vm590 = vcmask 64512
        %v591 = vsel %vm590, %v586, -inf
        %592 = vmax.xlane.f32.xlu0 %v591
        %v593 = vpop.xlane.xlu0 %592
        %v594 = vsel %vm590, %v587, -inf
        %595 = vmax.xlane.f32.xlu0 %v594
        %v596 = vpop.xlane.xlu0 %595
        %v597 = vsel %vm590, %v588, -inf
        %598 = vmax.xlane.f32.xlu0 %v597
        %v599 = vpop.xlane.xlu0 %598
        %v600 = vsel %vm590, %v589, -inf
        %601 = vmax.xlane.f32.xlu0 %v600
        %v602 = vpop.xlane.xlu0 %601
        %v603 = vsub.f32 %v586, %v593
        %v604 = vsub.f32 %v587, %v596
        %v605 = vsub.f32 %v588, %v599
        %v606 = vsub.f32 %v589, %v602
        %v607 = vmul.f32 %v603, 1.442695
        %v608 = vpow.pop %v607
        %v609 = vmul.f32 %v604, 1.442695
        %v610 = vpow.pop %v609
        %v611 = vmul.f32 %v605, 1.442695
        %v612 = vpow.pop %v611
        %v613 = vmul.f32 %v606, 1.442695
        %v614 = vpow.pop %v613
        %v615 = vsel %vm590, %v608, 0.0
        %616 = vadd.xlane.f32.xlu0 %v615
        %v617 = vpop.xlane.xlu0 %616
        %v618 = vsel %vm590, %v610, 0.0
        %619 = vadd.xlane.f32.xlu0 %v618
        %v620 = vpop.xlane.xlu0 %619
        %v621 = vsel %vm590, %v612, 0.0
        %622 = vadd.xlane.f32.xlu0 %v621
        %v623 = vpop.xlane.xlu0 %622
        %v624 = vsel %vm590, %v614, 0.0
        %625 = vadd.xlane.f32.xlu0 %v624
        %v626 = vpop.xlane.xlu0 %625
        %v627 = vrcp.pop %v617
        %v628 = vmul.f32 1.0, %v627
        %v629 = vrcp.pop %v620
        %v630 = vmul.f32 1.0, %v629
        %v631 = vrcp.pop %v623
        %v632 = vmul.f32 1.0, %v631
        %v633 = vrcp.pop %v626
        %v634 = vmul.f32 1.0, %v633
        %v635 = vmul.f32 %v608, %v628
        %v636 = vmul.f32 %v610, %v630
        %v637 = vmul.f32 %v612, %v632
        %v638 = vmul.f32 %v614, %v634
        %639 = vst.msk [vmem:[%s360] sm:$0xff] %vm590, %v635
        %640 = vst.msk [vmem:[%s360 + $0x8] sm:$0xff] %vm590, %v636
        %641 = vst.msk [vmem:[%s360 + $0x10] sm:$0xff] %vm590, %v637
        %642 = vst.msk [vmem:[%s360 + $0x18] sm:$0xff] %vm590, %v638
        %v643 = vpack.c.bf16 %v635, %v635
        %v644 = vpack.c.bf16 %v636, %v636
        %v645 = vpack.c.bf16 %v637, %v637
        %v646 = vpack.c.bf16 %v638, %v638
        %v648 = vsel %vm590, %v643, 0
        %vm650 = vcmask 1043456
        %v652 = vsel %vm650, %v389, 0
        %654 = vmatprep.subr.bf16.mxu0 0
        %655 = vmatpush1.bf16.msra.mxu0 0
        %656 = vmatprep.subr.bf16.mxu0 0
        %657 = vmatpush1.bf16.msra.mxu0 0
        %658 = vmatprep.subr.bf16.mxu0 0
        %659 = vmatpush1.bf16.msra.mxu0 0
        %660 = vmatprep.subr.bf16.mxu0 0
        %661 = vmatpush1.bf16.msra.mxu0 0
        %662 = vmatprep.subr.bf16.mxu0 0
        %663 = vmatpush1.bf16.msra.mxu0 0
        %664 = vmatprep.subr.bf16.mxu0 0
        %665 = vmatpush1.bf16.msra.mxu0 0
        %666 = vmatprep.subr.bf16.mxu0 0
        %667 = vmatpush1.bf16.msra.mxu0 0
        %668 = vmatprep.subr.bf16.mxu0 0
        %669 = vmatpush1.bf16.msra.mxu0 %v652
        %670 = vmatprep.subr.bf16.mxu0 0
        %671 = vmatpush2.bf16.msra.mxu0 0
        %672 = vmatprep.subr.bf16.mxu0 0
        %673 = vmatpush2.bf16.msra.mxu0 0
        %674 = vmatprep.subr.bf16.mxu0 0
        %675 = vmatpush2.bf16.msra.mxu0 0
        %676 = vmatprep.subr.bf16.mxu0 0
        %677 = vmatpush2.bf16.msra.mxu0 0
        %678 = vmatprep.subr.bf16.mxu0 0
        %679 = vmatpush2.bf16.msra.mxu0 0
        %680 = vmatprep.subr.bf16.mxu0 0
        %681 = vmatpush2.bf16.msra.mxu0 0
        %682 = vmatprep.subr.bf16.mxu0 0
        %683 = vmatpush2.bf16.msra.mxu0 0
        %684 = vmatprep.subr.bf16.mxu0 0
        %685 = vmatpush2.bf16.msra.mxu0 0
        %686 = vmatprep.mubr.bf16.mxu0 0
        %687 = vmatmul.mubr.bf16.gmra.mxu0 %v648
        %v688 = vpop.f32.mrf.mxu0
        %v689 = vadd.f32 0.0, %v688
        %v690 = vpop.f32.mrf.mxu0
        %v691 = vpop.f32.mrf.mxu0
        %v692 = vpop.f32.mrf.mxu0
        %693 = vdwg.mxu0
        %v695 = vsel %vm590, %v644, 0
        %v698 = vsel %vm650, %v390, 0
        %700 = vmatprep.subr.bf16.mxu0 0
        %701 = vmatpush1.bf16.msra.mxu0 0
        %702 = vmatprep.subr.bf16.mxu0 0
        %703 = vmatpush1.bf16.msra.mxu0 0
        %704 = vmatprep.subr.bf16.mxu0 0
        %705 = vmatpush1.bf16.msra.mxu0 0
        %706 = vmatprep.subr.bf16.mxu0 0
        %707 = vmatpush1.bf16.msra.mxu0 0
        %708 = vmatprep.subr.bf16.mxu0 0
        %709 = vmatpush1.bf16.msra.mxu0 0
        %710 = vmatprep.subr.bf16.mxu0 0
        %711 = vmatpush1.bf16.msra.mxu0 0
        %712 = vmatprep.subr.bf16.mxu0 0
        %713 = vmatpush1.bf16.msra.mxu0 0
        %714 = vmatprep.subr.bf16.mxu0 0
        %715 = vmatpush1.bf16.msra.mxu0 %v698
        %716 = vmatprep.subr.bf16.mxu0 0
        %717 = vmatpush2.bf16.msra.mxu0 0
        %718 = vmatprep.subr.bf16.mxu0 0
        %719 = vmatpush2.bf16.msra.mxu0 0
        %720 = vmatprep.subr.bf16.mxu0 0
        %721 = vmatpush2.bf16.msra.mxu0 0
        %722 = vmatprep.subr.bf16.mxu0 0
        %723 = vmatpush2.bf16.msra.mxu0 0
        %724 = vmatprep.subr.bf16.mxu0 0
        %725 = vmatpush2.bf16.msra.mxu0 0
        %726 = vmatprep.subr.bf16.mxu0 0
        %727 = vmatpush2.bf16.msra.mxu0 0
        %728 = vmatprep.subr.bf16.mxu0 0
        %729 = vmatpush2.bf16.msra.mxu0 0
        %730 = vmatprep.subr.bf16.mxu0 0
        %731 = vmatpush2.bf16.msra.mxu0 0
        %732 = vmatprep.mubr.bf16.mxu0 0
        %733 = vmatmul.mubr.bf16.gmra.mxu0 %v695
        %v734 = vpop.f32.mrf.mxu0
        %v735 = vadd.f32 0.0, %v734
        %v736 = vpop.f32.mrf.mxu0
        %v737 = vpop.f32.mrf.mxu0
        %v738 = vpop.f32.mrf.mxu0
        %739 = vdwg.mxu0
        %v741 = vsel %vm590, %v645, 0
        %v744 = vsel %vm650, %v391, 0
        %746 = vmatprep.subr.bf16.mxu0 0
        %747 = vmatpush1.bf16.msra.mxu0 0
        %748 = vmatprep.subr.bf16.mxu0 0
        %749 = vmatpush1.bf16.msra.mxu0 0
        %750 = vmatprep.subr.bf16.mxu0 0
        %751 = vmatpush1.bf16.msra.mxu0 0
        %752 = vmatprep.subr.bf16.mxu0 0
        %753 = vmatpush1.bf16.msra.mxu0 0
        %754 = vmatprep.subr.bf16.mxu0 0
        %755 = vmatpush1.bf16.msra.mxu0 0
        %756 = vmatprep.subr.bf16.mxu0 0
        %757 = vmatpush1.bf16.msra.mxu0 0
        %758 = vmatprep.subr.bf16.mxu0 0
        %759 = vmatpush1.bf16.msra.mxu0 0
        %760 = vmatprep.subr.bf16.mxu0 0
        %761 = vmatpush1.bf16.msra.mxu0 %v744
        %762 = vmatprep.subr.bf16.mxu0 0
        %763 = vmatpush2.bf16.msra.mxu0 0
        %764 = vmatprep.subr.bf16.mxu0 0
        %765 = vmatpush2.bf16.msra.mxu0 0
        %766 = vmatprep.subr.bf16.mxu0 0
        %767 = vmatpush2.bf16.msra.mxu0 0
        %768 = vmatprep.subr.bf16.mxu0 0
        %769 = vmatpush2.bf16.msra.mxu0 0
        %770 = vmatprep.subr.bf16.mxu0 0
        %771 = vmatpush2.bf16.msra.mxu0 0
        %772 = vmatprep.subr.bf16.mxu0 0
        %773 = vmatpush2.bf16.msra.mxu0 0
        %774 = vmatprep.subr.bf16.mxu0 0
        %775 = vmatpush2.bf16.msra.mxu0 0
        %776 = vmatprep.subr.bf16.mxu0 0
        %777 = vmatpush2.bf16.msra.mxu0 0
        %778 = vmatprep.mubr.bf16.mxu0 0
        %779 = vmatmul.mubr.bf16.gmra.mxu0 %v741
        %v780 = vpop.f32.mrf.mxu0
        %v781 = vadd.f32 0.0, %v780
        %v782 = vpop.f32.mrf.mxu0
        %v783 = vpop.f32.mrf.mxu0
        %v784 = vpop.f32.mrf.mxu0
        %785 = vdwg.mxu0
        %v787 = vsel %vm590, %v646, 0
        %v790 = vsel %vm650, %v392, 0
        %792 = vmatprep.subr.bf16.mxu0 0
        %793 = vmatpush1.bf16.msra.mxu0 0
        %794 = vmatprep.subr.bf16.mxu0 0
        %795 = vmatpush1.bf16.msra.mxu0 0
        %796 = vmatprep.subr.bf16.mxu0 0
        %797 = vmatpush1.bf16.msra.mxu0 0
        %798 = vmatprep.subr.bf16.mxu0 0
        %799 = vmatpush1.bf16.msra.mxu0 0
        %800 = vmatprep.subr.bf16.mxu0 0
        %801 = vmatpush1.bf16.msra.mxu0 0
        %802 = vmatprep.subr.bf16.mxu0 0
        %803 = vmatpush1.bf16.msra.mxu0 0
        %804 = vmatprep.subr.bf16.mxu0 0
        %805 = vmatpush1.bf16.msra.mxu0 0
        %806 = vmatprep.subr.bf16.mxu0 0
        %807 = vmatpush1.bf16.msra.mxu0 %v790
        %808 = vmatprep.subr.bf16.mxu0 0
        %809 = vmatpush2.bf16.msra.mxu0 0
        %810 = vmatprep.subr.bf16.mxu0 0
        %811 = vmatpush2.bf16.msra.mxu0 0
        %812 = vmatprep.subr.bf16.mxu0 0
        %813 = vmatpush2.bf16.msra.mxu0 0
        %814 = vmatprep.subr.bf16.mxu0 0
        %815 = vmatpush2.bf16.msra.mxu0 0
        %816 = vmatprep.subr.bf16.mxu0 0
        %817 = vmatpush2.bf16.msra.mxu0 0
        %818 = vmatprep.subr.bf16.mxu0 0
        %819 = vmatpush2.bf16.msra.mxu0 0
        %820 = vmatprep.subr.bf16.mxu0 0
        %821 = vmatpush2.bf16.msra.mxu0 0
        %822 = vmatprep.subr.bf16.mxu0 0
        %823 = vmatpush2.bf16.msra.mxu0 0
        %824 = vmatprep.mubr.bf16.mxu0 0
        %825 = vmatmul.mubr.bf16.gmra.mxu0 %v787
        %v826 = vpop.f32.mrf.mxu0
        %v827 = vadd.f32 0.0, %v826
        %v828 = vpop.f32.mrf.mxu0
        %v829 = vpop.f32.mrf.mxu0
        %v830 = vpop.f32.mrf.mxu0
        %831 = vdwg.mxu0
        %v832 = vcombine.low %v689, %v781
        %v833 = vcombine.high %v689, %v781
        %v835 = vunpack.c.l.s4 1983009808
        %v836 = vunpack.c.0.s8 %v835
        %v837 = vlaneseq
        %v838 = vshrl.u32 %v837, 7
        %v839 = vsub.s32 %v836, %v838
        %v840 = vrot.slane %v832, %v839
        %v842 = vunpack.c.l.s4 1983009808
        %v843 = vunpack.c.0.s8 %v842
        %v844 = vlaneseq
        %v845 = vshrl.u32 %v844, 7
        %v846 = vsub.s32 %v843, %v845
        %v847 = vrot.slane %v833, %v846
        %v848 = vcombine.low %v735, %v827
        %v849 = vcombine.high %v735, %v827
        %v851 = vunpack.c.l.s4 1983009808
        %v852 = vunpack.c.0.s8 %v851
        %v853 = vlaneseq
        %v854 = vshrl.u32 %v853, 7
        %v855 = vsub.s32 %v852, %v854
        %v856 = vrot.slane %v848, %v855
        %v858 = vunpack.c.l.s4 1983009808
        %v859 = vunpack.c.0.s8 %v858
        %v860 = vlaneseq
        %v861 = vshrl.u32 %v860, 7
        %v862 = vsub.s32 %v859, %v861
        %v863 = vrot.slane %v849, %v862
        %v864 = vcombine.low %v840, %v856
        %v865 = vcombine.high %v840, %v856
        %v867 = vunpack.c.l.s4 1934713408
        %v868 = vunpack.c.0.s8 %v867
        %v869 = vlaneseq
        %v870 = vshrl.u32 %v869, 7
        %v871 = vsub.s32 %v868, %v870
        %v872 = vrot.slane %v864, %v871
        %v874 = vunpack.c.l.s4 1934713408
        %v875 = vunpack.c.0.s8 %v874
        %v876 = vlaneseq
        %v877 = vshrl.u32 %v876, 7
        %v878 = vsub.s32 %v875, %v877
        %v879 = vrot.slane %v865, %v878
        %v880 = vcombine.low %v847, %v863
        %v881 = vcombine.high %v847, %v863
        %v883 = vunpack.c.l.s4 1934713408
        %v884 = vunpack.c.0.s8 %v883
        %v885 = vlaneseq
        %v886 = vshrl.u32 %v885, 7
        %v887 = vsub.s32 %v884, %v886
        %v888 = vrot.slane %v880, %v887
        %v890 = vunpack.c.l.s4 1934713408
        %v891 = vunpack.c.0.s8 %v890
        %v892 = vlaneseq
        %v893 = vshrl.u32 %v892, 7
        %v894 = vsub.s32 %v891, %v893
        %v895 = vrot.slane %v881, %v894
        %v896 = vcombine.high %v872, 0.0
        %v897 = vcombine.high %v879, 0.0
        %v898 = vcombine.high %v888, 0.0
        %v899 = vcombine.high %v895, 0.0
        %v900 = vcombine.low %v872, %v879
        %v902 = vunpack.c.l.s4 1983009808
        %v903 = vunpack.c.0.s8 %v902
        %v904 = vlaneseq
        %v905 = vshrl.u32 %v904, 7
        %v906 = vsub.s32 %v903, %v905
        %v907 = vrot.slane %v900, %v906
        %v908 = vcombine.low %v896, %v897
        %v910 = vunpack.c.l.s4 1983009808
        %v911 = vunpack.c.0.s8 %v910
        %v912 = vlaneseq
        %v913 = vshrl.u32 %v912, 7
        %v914 = vsub.s32 %v911, %v913
        %v915 = vrot.slane %v908, %v914
        %v916 = vcombine.low %v888, %v895
        %v918 = vunpack.c.l.s4 1983009808
        %v919 = vunpack.c.0.s8 %v918
        %v920 = vlaneseq
        %v921 = vshrl.u32 %v920, 7
        %v922 = vsub.s32 %v919, %v921
        %v923 = vrot.slane %v916, %v922
        %v924 = vcombine.low %v898, %v899
        %v926 = vunpack.c.l.s4 1983009808
        %v927 = vunpack.c.0.s8 %v926
        %v928 = vlaneseq
        %v929 = vshrl.u32 %v928, 7
        %v930 = vsub.s32 %v927, %v929
        %v931 = vrot.slane %v924, %v930
        %v932 = vcombine.low %v907, %v915
        %v933 = vcombine.high %v907, %v915
        %v935 = vunpack.c.l.s4 1934713408
        %v936 = vunpack.c.0.s8 %v935
        %v937 = vlaneseq
        %v938 = vshrl.u32 %v937, 7
        %v939 = vsub.s32 %v936, %v938
        %v940 = vrot.slane %v932, %v939
        %v942 = vunpack.c.l.s4 1934713408
        %v943 = vunpack.c.0.s8 %v942
        %v944 = vlaneseq
        %v945 = vshrl.u32 %v944, 7
        %v946 = vsub.s32 %v943, %v945
        %v947 = vrot.slane %v933, %v946
        %v948 = vcombine.low %v923, %v931
        %v949 = vcombine.high %v923, %v931
        %v951 = vunpack.c.l.s4 1934713408
        %v952 = vunpack.c.0.s8 %v951
        %v953 = vlaneseq
        %v954 = vshrl.u32 %v953, 7
        %v955 = vsub.s32 %v952, %v954
        %v956 = vrot.slane %v948, %v955
        %v958 = vunpack.c.l.s4 1934713408
        %v959 = vunpack.c.0.s8 %v958
        %v960 = vlaneseq
        %v961 = vshrl.u32 %v960, 7
        %v962 = vsub.s32 %v959, %v961
        %v963 = vrot.slane %v949, %v962
        %v964 = vcombine.low %v940, %v956
        %v965 = vcombine.high %v940, %v956
        %v966 = vcombine.low %v947, %v963
        %v967 = vcombine.high %v947, %v963
        %969 = vrot.lane.b32.xlu0 %v965, 32
        %v970 = vpop.permute.xlu0 %969
        %973 = vrot.lane.b32.xlu0 %v966, 64
        %v974 = vpop.permute.xlu0 %973
        %977 = vrot.lane.b32.xlu0 %v967, 96
        %v978 = vpop.permute.xlu0 %977
        %v980 = vsel %vm393, %v964, %v970
        %vm981 = vcmask 523264
        %v982 = vsel %vm981, %v980, %v974
        %vm983 = vcmask 785408
        %v984 = vsel %vm983, %v982, %v978
        %985 = vst [vmem:[%s353] sm:$0xff] %v984
        %s986 = sand.u32 %s157, 1
        %s987 = scalar_lea.sflag [#allocation4], %s986
        %s988 = sand.u32 %s157, 1
        %s989 = smul.addr %s988, 8
        %s990 = scalar_lea.vmem [#allocation8], %s989
        %s991 = sand.u32 %s185, 1
        %s992 = scalar_lea.sflag [#allocation10], %s991
        %s993 = sand.u32 %s185, 1
        %s994 = smul.addr %s993, 32
        %s995 = scalar_lea.vmem [#allocation9], %s994
        // Predicated region
        $region49: #{tpu_custom_call.1} parent=35 // pred_check
          %p996 = pneg %p167
        $region50: #{tpu_custom_call.1} parent=35 // pred_check_branch
          %998 = sbr.rel (%p996) target = $region52
        $region51: #{tpu_custom_call.1} parent=35 // pred_region
          %s1000 = ssub.s32 128, 128
          %1001 = vsyncadd %s987, %s1000
          %s1002 = sadd.s32 %s34, %s33
          %s1003 = smul.addr %s1002, 128
          %s1004 = scalar_lea.hbm %s4, %s1003
          %s1006 = sshll.u32 %s990, 4
          %s1007 = int_to_ptr.vmem [resolvable:$true] %s1006
          %1009 = dma.vmem_to_hbm [thread:$0]  %s1007, 128, %s1004, %s987
        $region52: #{tpu_custom_call.1} parent=35 // pred_fallthru
          _
        // Predicated region
        $region53: #{tpu_custom_call.1} parent=35 // pred_check
          %p1010 = pneg %p195
        $region54: #{tpu_custom_call.1} parent=35 // pred_check_branch
          %1012 = sbr.rel (%p1010) target = $region56
        $region55: #{tpu_custom_call.1} parent=35 // pred_region
          %s1014 = ssub.s32 512, 512
          %1015 = vsyncadd %s992, %s1014
          %s1016 = smul.addr %s33, 4
          %s1017 = sadd.s32 %s34, %s1016
          %s1018 = smul.addr %s1017, 128
          %s1019 = scalar_lea.hbm %s5, %s1018
          %s1020 = sshll.u32 %s995, 4
          %s1021 = int_to_ptr.vmem [resolvable:$true] %s1020
          %1026 = dma.vmem_to_hbm [thread:$0]  %s1021, 512, %s1019, %s992, 128, 128, 8
        $region56: #{tpu_custom_call.1} parent=35 // pred_fallthru
          _
      $region36: #{tpu_custom_call.1} parent=5 // pred_fallthru
        _
      %p1027 = scmp.le.s32.totalorder 2, %s24
      // Predicated region
      $region57: #{tpu_custom_call.1} parent=5 // pred_check
        %p1028 = pneg %p1027
      $region58: #{tpu_custom_call.1} parent=5 // pred_check_branch
        %1030 = sbr.rel (%p1028) target = $region60
      $region59: #{tpu_custom_call.1} parent=5 // pred_region
        %s1031 = ssub.s32 %s24, 2
        // Predicated region
        $region61: #{tpu_custom_call.1} parent=59 // pred_check
          %p1032 = pneg %p173
        $region62: #{tpu_custom_call.1} parent=59 // pred_check_branch
          %1034 = sbr.rel (%p1032) target = $region64
        $region63: #{tpu_custom_call.1} parent=59 // pred_region
          %s1035 = sand.u32 %s158, 1
          %s1036 = scalar_lea.sflag [#allocation4], %s1035
          %s1037 = sand.u32 %s158, 1
          %s1038 = smul.addr %s1037, 8
          %s1039 = scalar_lea.vmem [#allocation8], %s1038
          %1040 = dma.done %s1036, 128
        $region64: #{tpu_custom_call.1} parent=59 // pred_fallthru
          _
        // Predicated region
        $region65: #{tpu_custom_call.1} parent=59 // pred_check
          %p1041 = pneg %p201
        $region66: #{tpu_custom_call.1} parent=59 // pred_check_branch
          %1043 = sbr.rel (%p1041) target = $region68
        $region67: #{tpu_custom_call.1} parent=59 // pred_region
          %s1044 = sand.u32 %s186, 1
          %s1045 = scalar_lea.sflag [#allocation10], %s1044
          %s1046 = sand.u32 %s186, 1
          %s1047 = smul.addr %s1046, 32
          %s1048 = scalar_lea.vmem [#allocation9], %s1047
          %1049 = dma.done %s1045, 512
        $region68: #{tpu_custom_call.1} parent=59 // pred_fallthru
          _
      $region60: #{tpu_custom_call.1} parent=5 // pred_fallthru
        _
    $region6: #{tpu_custom_call.1} parent=1 // loop_footer
      %s28 = sadd.s32 1, %s24
    $region7: #{tpu_custom_call.1} parent=1 // loop_footer_branch
      %23 = sbr.rel target = $region3
    $region8: #{tpu_custom_call.1} parent=1 // loop_exit
      _
    %1050 = vsyncpa [#allocation3], 1
    %s1051 = scalar_lea.sflag [#allocation3], 1
    %1052 = vsyncpa %s1051, 1
    %1053 = vsyncpa [#allocation6], 1
    %s1054 = scalar_lea.sflag [#allocation6], 1
    %1055 = vsyncpa %s1054, 1
    %1056 = vsyncpa [#allocation4], 1
    %s1057 = scalar_lea.sflag [#allocation4], 1
    %1058 = vsyncpa %s1057, 1
    %1059 = vsyncpa [#allocation10], 1
    %s1060 = scalar_lea.sflag [#allocation10], 1
    %1061 = vsyncpa %s1060, 1

</llo_original>
